<compile_context>
chip_gen: v5e
topology: v5e:2x2
jax: 0.10.0
libtpu: 0.0.40
codegen_flags: <defaults>
</compile_context>

<pallas_src>
import functools

import jax
import jax.numpy as jnp
from jax.experimental import pallas as pl
from jax.experimental.pallas import tpu as pltpu


def _forward_diffusion_kernel(t_ref, sqrt_ac_ref, sqrt_1mac_ref,
                              x_ref, noise_ref, out_ref):
    """out = sqrt_ac[t[b]] * x + sqrt_1mac[t[b]] * noise for one (batch, S-tile)."""
    b = pl.program_id(0)
    tb = t_ref[b]                 # per-batch timestep, SMEM scalar read
    sa = sqrt_ac_ref[tb]          # scalar gather from SMEM schedule table (f32)
    sb = sqrt_1mac_ref[tb]
    # Scalar-splat FMA over the (1, TILE_S, LANES) tile; compute in f32, cast on
    # store so bf16 inputs/outputs work.  Fully hidden under the HBM DMA.
    out_ref[...] = (sa * x_ref[...] + sb * noise_ref[...]).astype(out_ref.dtype)


def _pick_lanes(chw):
    """Largest multiple of 128 (<= 512) dividing chw, or None if chw % 128 != 0."""
    for cand in (512, 256, 128):
        if chw % cand == 0:
            return cand
    return None


def _pick_tile_s(s, lanes, dtype_bytes, target_bytes=1 << 20):
    """Largest multiple of 8 dividing s with tile <= ~target_bytes; else s."""
    if s <= 8:
        return s
    max_ts = (target_bytes // (lanes * dtype_bytes)) // 8 * 8
    max_ts = max(8, min(s, max_ts))
    for ts in range(max_ts, 7, -8):
        if s % ts == 0:
            return ts
    # No multiple-of-8 divisor of s: fall back to one block over the whole axis.
    return s


@functools.partial(jax.jit, static_argnames=())
def forward_diffusion_pallas(x, t, noise, sqrt_ac, sqrt_1mac):
    """x_t = sqrt_ac[t]*x + sqrt_1mac[t]*noise, NCHW in / NCHW out."""
    assert x.shape == noise.shape
    B, C, H, W = x.shape
    chw = C * H * W
    dtype_bytes = jnp.dtype(x.dtype).itemsize

    lanes = _pick_lanes(chw)
    xf = x.reshape(B, chw)
    nf = noise.reshape(B, chw)
    pad = 0
    if lanes is None:
        # TODO(synk): ragged C*H*W (not a multiple of 128) falls back to padding,
        # which costs extra HBM copies; real image shapes should not hit this.
        lanes = 128
        pad = (-chw) % lanes
        xf = jnp.pad(xf, ((0, 0), (0, pad)))
        nf = jnp.pad(nf, ((0, 0), (0, pad)))
    chw_p = chw + pad
    s = chw_p // lanes
    tile_s = _pick_tile_s(s, lanes, dtype_bytes)
    n_s_tiles = s // tile_s

    xf = xf.reshape(B, s, lanes)
    nf = nf.reshape(B, s, lanes)

    t32 = t.astype(jnp.int32)
    sqrt_ac = sqrt_ac.astype(jnp.float32)
    sqrt_1mac = sqrt_1mac.astype(jnp.float32)

    # Per-step working set: 3 arrays (x, noise, out) x 2 pipeline buffers x tile.
    tile_bytes = tile_s * lanes * dtype_bytes
    working = 3 * 2 * tile_bytes
    vmem_limit = int(min(32 * 1024 * 1024, max(2 * working, 8 * 1024 * 1024)))

    block = pl.BlockSpec((1, tile_s, lanes), lambda b, si, *_: (b, si, 0))
    grid_spec = pltpu.PrefetchScalarGridSpec(
        num_scalar_prefetch=3,          # t, sqrt_ac, sqrt_1mac -> SMEM
        grid=(B, n_s_tiles),
        in_specs=[block, block],        # x, noise
        out_specs=block,                # x_t
    )

    out = pl.pallas_call(
        _forward_diffusion_kernel,
        out_shape=jax.ShapeDtypeStruct((B, s, lanes), x.dtype),
        grid_spec=grid_spec,
        compiler_params=pltpu.CompilerParams(
            dimension_semantics=("parallel", "parallel"),  # megacore-friendly
            vmem_limit_bytes=vmem_limit,
        ),
        cost_estimate=pl.CostEstimate(
            flops=3 * B * chw,
            transcendentals=0,
            bytes_accessed=3 * B * chw * dtype_bytes,
        ),
    )(t32, sqrt_ac, sqrt_1mac, xf, nf)

    if pad:
        out = out.reshape(B, chw_p)[:, :chw]
    return out.reshape(B, C, H, W)


class BilevelDiffusion:
    """JAX/Pallas port of the forward pass of the PyTorch BilevelDiffusion."""

    def __init__(self, image_size, in_channels, time_embedding_dim=256,
                 timesteps=1000, back_steps=50, truncation=5,
                 base_dim=32, dim_mults=(1, 2, 4, 8), betas=None):
        self.timesteps = timesteps
        self.back_steps = back_steps
        self.truncation = truncation
        self.in_channels = in_channels
        self.image_size = image_size
        self.time_embedding_dim = time_embedding_dim
        self.base_dim = base_dim
        self.dim_mults = dim_mults

        # scheduler.get_betas() stand-in: standard linear DDPM schedule.
        # TODO(synk): the `scheduler` object is not defined in the reference;
        # a linear beta schedule is used unless betas are supplied.
        if betas is None:
            betas = jnp.linspace(1e-4, 0.02, timesteps, dtype=jnp.float32)
        self.betas = betas
        self.alphas = 1.0 - self.betas
        self.alphas_cumprod = jnp.cumprod(self.alphas, axis=-1)
        self.sqrt_alphas_cumprod = jnp.sqrt(self.alphas_cumprod)
        self.sqrt_one_minus_alphas_cumprod = jnp.sqrt(1.0 - self.alphas_cumprod)

    def _forward_diffusion(self, x_0, t, noise):
        return forward_diffusion_pallas(
            x_0, t, noise,
            self.sqrt_alphas_cumprod, self.sqrt_one_minus_alphas_cumprod)

    def forward(self, x, t, noise):
        x_t = self._forward_diffusion(x, t, noise)
        # TODO(synk): pred_noise = Unet(x_t, t) — Unet is not defined in the
        # reference source, so the forward-diffusion result is returned.
        return x_t

    def __call__(self, x, t, noise):
        return self.forward(x, t, noise)


if __name__ == "__main__":
    key = jax.random.PRNGKey(0)
    k_x, k_n, k_t = jax.random.split(key, 3)

    B, C, H, W = 2, 4, 16, 16
    timesteps = 1000

    model = BilevelDiffusion(image_size=H, in_channels=C, timesteps=timesteps)

    x = jax.random.normal(k_x, (B, C, H, W), dtype=jnp.float32)
    noise = jax.random.normal(k_n, (B, C, H, W), dtype=jnp.float32)
    t = jax.random.randint(k_t, (B,), 0, timesteps, dtype=jnp.int32)

    x_t = model(x, t, noise)
    x_t = jax.block_until_ready(x_t)

    # Pure-JAX reference for the translated hot path.
    sa = model.sqrt_alphas_cumprod[t].reshape(B, 1, 1, 1)
    sb = model.sqrt_one_minus_alphas_cumprod[t].reshape(B, 1, 1, 1)
    ref = sa * x + sb * noise
    max_err = float(jnp.max(jnp.abs(x_t - ref)))
    assert jnp.allclose(x_t, ref, atol=1e-6, rtol=1e-6), f"max abs err {max_err}"

    print("KERNEL_OK")
</pallas_src>

<mosaic_0001>
module attributes {stable_mosaic.version = 11 : i64} {
  func.func @_forward_diffusion_kernel(%arg0: i32, %arg1: i32, %arg2: memref<2xi32, #tpu.memory_space<smem>>, %arg3: memref<1000xf32, #tpu.memory_space<smem>>, %arg4: memref<1000xf32, #tpu.memory_space<smem>>, %arg5: memref<1x2x512xf32, #tpu.memory_space<vmem>>, %arg6: memref<1x2x512xf32, #tpu.memory_space<vmem>>, %arg7: memref<1x2x512xf32, #tpu.memory_space<vmem>>) attributes {dimension_semantics = [#tpu.dimension_semantics<parallel>, #tpu.dimension_semantics<parallel>], iteration_bounds = array<i64: 2, 1>, scalar_prefetch = 3 : i64, scratch_operands = 0 : i64, tpu.core_type = #tpu.core_type<tc>, window_params = [{transform_indices = @transform_0, window_bounds = array<i64: 1, 2, 512>}, {transform_indices = @transform_1, window_bounds = array<i64: 1, 2, 512>}, {transform_indices = @transform_2, window_bounds = array<i64: 1, 2, 512>}]} {
    %0 = arith.index_cast %arg0 : i32 to index
    %1 = memref.load %arg2[%0] : memref<2xi32, #tpu.memory_space<smem>>
    %2 = arith.index_cast %1 : i32 to index
    %3 = memref.load %arg3[%2] : memref<1000xf32, #tpu.memory_space<smem>>
    %4 = arith.index_cast %1 : i32 to index
    %5 = memref.load %arg4[%4] : memref<1000xf32, #tpu.memory_space<smem>>
    %c0 = arith.constant 0 : index
    %c0_0 = arith.constant 0 : index
    %c0_1 = arith.constant 0 : index
    %6 = vector.load %arg5[%c0, %c0_0, %c0_1] : memref<1x2x512xf32, #tpu.memory_space<vmem>>, vector<1x2x512xf32>
    %7 = vector.broadcast %3 : f32 to vector<1x2x512xf32>
    %8 = arith.mulf %7, %6 : vector<1x2x512xf32>
    %c0_2 = arith.constant 0 : index
    %c0_3 = arith.constant 0 : index
    %c0_4 = arith.constant 0 : index
    %9 = vector.load %arg6[%c0_2, %c0_3, %c0_4] : memref<1x2x512xf32, #tpu.memory_space<vmem>>, vector<1x2x512xf32>
    %10 = vector.broadcast %5 : f32 to vector<1x2x512xf32>
    %11 = arith.mulf %10, %9 : vector<1x2x512xf32>
    %12 = arith.addf %8, %11 : vector<1x2x512xf32>
    %c0_5 = arith.constant 0 : index
    %c0_6 = arith.constant 0 : index
    %c0_7 = arith.constant 0 : index
    %13 = vector.load %arg7[%c0_5, %c0_6, %c0_7] : memref<1x2x512xf32, #tpu.memory_space<vmem>>, vector<1x2x512xf32>
    tpu.vector_store %arg7[%c0_5, %c0_6, %c0_7], %12 {strides = array<i32>} : memref<1x2x512xf32, #tpu.memory_space<vmem>>, vector<1x2x512xf32>,
    return
  }
  func.func @transform_0(%arg0: i32, %arg1: i32, %arg2: memref<2xi32, #tpu.memory_space<smem>>, %arg3: memref<1000xf32, #tpu.memory_space<smem>>, %arg4: memref<1000xf32, #tpu.memory_space<smem>>) -> (i32, i32, i32) {
    %c0_i32 = arith.constant 0 : i32
    %c0_i32_0 = arith.constant 0 : i32
    return %arg0, %arg1, %c0_i32 : i32, i32, i32
  }
  func.func @transform_1(%arg0: i32, %arg1: i32, %arg2: memref<2xi32, #tpu.memory_space<smem>>, %arg3: memref<1000xf32, #tpu.memory_space<smem>>, %arg4: memref<1000xf32, #tpu.memory_space<smem>>) -> (i32, i32, i32) {
    %c0_i32 = arith.constant 0 : i32
    %c0_i32_0 = arith.constant 0 : i32
    return %arg0, %arg1, %c0_i32 : i32, i32, i32
  }
  func.func @transform_2(%arg0: i32, %arg1: i32, %arg2: memref<2xi32, #tpu.memory_space<smem>>, %arg3: memref<1000xf32, #tpu.memory_space<smem>>, %arg4: memref<1000xf32, #tpu.memory_space<smem>>) -> (i32, i32, i32) {
    %c0_i32 = arith.constant 0 : i32
    %c0_i32_0 = arith.constant 0 : i32
    return %arg0, %arg1, %c0_i32 : i32, i32, i32
  }
}

</mosaic_0001>

<llo_original>
// kernel: forward_diffusion_pallas.1
$region0: #{forward_diffusion_pallas.1}
  #allocation0 [shape = 'u32[]', space=smem, size = 0x4, offset = 0x4, fixed_abs, tag = 'smem constant byte address 0x4 - core index']
  #allocation1 [shape = 'u32[72,128]{1,0:T(1,128)}', space=vmem, size = 0x9000, scoped, tag = 'internal scratch']
  #allocation2 [shape = 's32[1]{0}', space=sflag, size = 0x4, scoped, tag = 'scoped memory for forward_diffusion_pallas.1']
  #allocation3 [shape = 'u8[512]{0}', space=smem, size = 0x200, scoped, tag = 'prefetched SMEM operand 0']
  #allocation4 [shape = 'u8[4096]{0}', space=smem, size = 0x1000, scoped, tag = 'prefetched SMEM operand 1']
  #allocation5 [shape = 'u8[4096]{0}', space=smem, size = 0x1000, scoped, tag = 'prefetched SMEM operand 2']
  %s0 = inlined_call_operand.vmem [shape: s32[2], index: 0, kind: input, shape index: {}]
  %s1 = inlined_call_operand.vmem [shape: f32[1000], index: 1, kind: input, shape index: {}]
  %s2 = inlined_call_operand.vmem [shape: f32[1000], index: 2, kind: input, shape index: {}]
  %s3 = inlined_call_operand.vmem [shape: f32[2,2,512], index: 3, kind: input, shape index: {}]
  %s4 = inlined_call_operand.vmem [shape: f32[2,2,512], index: 4, kind: input, shape index: {}]
  %s5 = inlined_call_operand.vmem [shape: f32[2,2,512], index: 5, kind: output, shape index: {}]
  %s6 = sld [smem:[#allocation0]]
  $region41: #{forward_diffusion_pallas.1} parent=0
    _
  %s8 = ssub.s32 1, %s6
  %s9 = scalar_select 0, %s8, %s6
  %s11 = sshll.u32 %s0, 4
  %s12 = int_to_ptr.vmem [resolvable:$true] %s11
  %14 = dma.vmem_to_smem %s12, 16, [#allocation3], [#allocation2]
  %s16 = sshll.u32 %s1, 4
  %s17 = int_to_ptr.vmem [resolvable:$true] %s16
  %19 = dma.vmem_to_smem %s17, 128, [#allocation4], [#allocation2]
  %s21 = sshll.u32 %s2, 4
  %s22 = int_to_ptr.vmem [resolvable:$true] %s21
  %24 = dma.vmem_to_smem %s22, 128, [#allocation5], [#allocation2]
  %26 = dma.done [#allocation2], 272
  %27 = sfence
  loop: start=0, step=1, limit=4
  $region2: #{forward_diffusion_pallas.1} parent=0 // loop_pre_header
    _
  $region3: #{forward_diffusion_pallas.1} parent=0 // loop_header
    %s29 = sphi 0, %s33
    %p30 = scmp.ge.s32.totalorder %s29, 4
    %s36 = sphi 0, %s48
    %s37 = sphi 0, %s44
    %s38 = sphi 0, %s36
    %s39 = sphi 0, %s37
    %s40 = sphi 0, %s38
    %s41 = sphi 0, %s39
    %s53 = sphi 0, %s55
    %s56 = sphi 0, %s53
    %s57 = sphi 0, %s56
    %s73 = sphi 0, %s57
    %s81 = sphi 0, %s83
    %s84 = sphi 0, %s81
    %s85 = sphi 0, %s84
    %s101 = sphi 0, %s85
    %s109 = sphi 0, %s111
    %s112 = sphi 0, %s109
    %s113 = sphi 0, %s112
    %s129 = sphi 0, %s113
  $region4: #{forward_diffusion_pallas.1} parent=0 // loop_header_branch
    %32 = sbr.rel (%p30) target = $region8
  $region5: #{forward_diffusion_pallas.1} parent=0 // loop_body
    %s34 = ssub.s32 %s29, 1
    %s35 = ssub.s32 %s29, 2
    %s42 = sadd.s32 1, %s37
    %p43 = scmp.ge.s32.totalorder %s42, 1
    %s44 = scalar_select %p43, 0, %s42
    %s45 = sadd.s32 1, %s36
    %s46 = scalar_select %p43, %s45, %s36
    %p47 = scmp.ge.s32.totalorder %s46, 2
    %s48 = scalar_select %p47, 0, %s46
    %s49 = ssub.s32 %s36, %s48
    %s50 = ssub.s32 %s37, %s44
    %s51 = sor.u32 %s49, %s50
    %p52 = scmp.eq.s32.totalorder %s51, 0
    %s54 = sadd.s32 %s53, 1
    %s55 = scalar_select %p52, %s53, %s54
    %p58 = pneg %p52
    %p59 = scmp.eq.s32.totalorder %s29, 1
    %p60 = por %p58, %p59
    %p61 = scmp.ne.s32.totalorder %s53, %s56
    %p62 = scmp.eq.s32.totalorder %s29, 0
    %p63 = por %p61, %p62
    %p64 = scmp.ne.s32.totalorder %s53, %s56
    %p65 = scmp.eq.s32.totalorder %s34, 1
    %p66 = por %p64, %p65
    %p67 = scmp.ne.s32.totalorder %s56, %s57
    %p68 = scmp.eq.s32.totalorder %s34, 0
    %p69 = por %p67, %p68
    %p70 = scmp.ne.s32.totalorder %s56, %s57
    %p71 = scmp.eq.s32.totalorder %s35, 1
    %p72 = por %p70, %p71
    %p74 = scmp.ne.s32.totalorder %s57, %s73
    %p75 = scmp.eq.s32.totalorder %s35, 0
    %p76 = por %p74, %p75
    %s77 = ssub.s32 %s36, %s48
    %s78 = ssub.s32 %s37, %s44
    %s79 = sor.u32 %s77, %s78
    %p80 = scmp.eq.s32.totalorder %s79, 0
    %s82 = sadd.s32 %s81, 1
    %s83 = scalar_select %p80, %s81, %s82
    %p86 = pneg %p80
    %p87 = scmp.eq.s32.totalorder %s29, 1
    %p88 = por %p86, %p87
    %p89 = scmp.ne.s32.totalorder %s81, %s84
    %p90 = scmp.eq.s32.totalorder %s29, 0
    %p91 = por %p89, %p90
    %p92 = scmp.ne.s32.totalorder %s81, %s84
    %p93 = scmp.eq.s32.totalorder %s34, 1
    %p94 = por %p92, %p93
    %p95 = scmp.ne.s32.totalorder %s84, %s85
    %p96 = scmp.eq.s32.totalorder %s34, 0
    %p97 = por %p95, %p96
    %p98 = scmp.ne.s32.totalorder %s84, %s85
    %p99 = scmp.eq.s32.totalorder %s35, 1
    %p100 = por %p98, %p99
    %p102 = scmp.ne.s32.totalorder %s85, %s101
    %p103 = scmp.eq.s32.totalorder %s35, 0
    %p104 = por %p102, %p103
    %s105 = ssub.s32 %s36, %s48
    %s106 = ssub.s32 %s37, %s44
    %s107 = sor.u32 %s105, %s106
    %p108 = scmp.eq.s32.totalorder %s107, 0
    %s110 = sadd.s32 %s109, 1
    %s111 = scalar_select %p108, %s109, %s110
    %p114 = pneg %p108
    %p115 = scmp.eq.s32.totalorder %s29, 1
    %p116 = por %p114, %p115
    %p117 = scmp.ne.s32.totalorder %s109, %s112
    %p118 = scmp.eq.s32.totalorder %s29, 0
    %p119 = por %p117, %p118
    %p120 = scmp.ne.s32.totalorder %s109, %s112
    %p121 = scmp.eq.s32.totalorder %s34, 1
    %p122 = por %p120, %p121
    %p123 = scmp.ne.s32.totalorder %s112, %s113
    %p124 = scmp.eq.s32.totalorder %s34, 0
    %p125 = por %p123, %p124
    %p126 = scmp.ne.s32.totalorder %s112, %s113
    %p127 = scmp.eq.s32.totalorder %s35, 1
    %p128 = por %p126, %p127
    %p130 = scmp.ne.s32.totalorder %s113, %s129
    %p131 = scmp.eq.s32.totalorder %s35, 0
    %p132 = por %p130, %p131
    %p133 = scmp.le.s32.totalorder 1, %s29
    %p134 = scmp.lt.s32.totalorder %s29, 3
    %p135 = pnand %p133, %p134
    %p136 = pneg %p135
    // Predicated region
    $region9: #{forward_diffusion_pallas.1} parent=5 // pred_check
      _
    $region10: #{forward_diffusion_pallas.1} parent=5 // pred_check_branch
      %138 = sbr.rel (%p135) target = $region12
    $region11: #{forward_diffusion_pallas.1} parent=5 // pred_region
      %s139 = ssub.s32 %s29, 1
    $region12: #{forward_diffusion_pallas.1} parent=5 // pred_fallthru
      _
    %p140 = scmp.lt.s32.totalorder %s29, 2
    // Predicated region
    $region13: #{forward_diffusion_pallas.1} parent=5 // pred_check
      %p141 = pneg %p140
    $region14: #{forward_diffusion_pallas.1} parent=5 // pred_check_branch
      %143 = sbr.rel (%p141) target = $region16
    $region15: #{forward_diffusion_pallas.1} parent=5 // pred_region
      // Predicated region
      $region17: #{forward_diffusion_pallas.1} parent=15 // pred_check
        %p144 = pneg %p63
      $region18: #{forward_diffusion_pallas.1} parent=15 // pred_check_branch
        %146 = sbr.rel (%p144) target = $region20
      $region19: #{forward_diffusion_pallas.1} parent=15 // pred_region
        %p147 = scmp.lt.s32.totalorder %s36, 1
        %s148 = scalar_select %p147, %s36, 1
        %p149 = scmp.lt.s32.totalorder %s37, 0
        %s150 = scalar_select %p149, %s37, 0
        %s151 = smul.addr %s150, 4
        %s152 = smul.addr %s148, 4
        %s153 = sadd.s32 %s151, %s152
        %s154 = smul.addr %s153, 2
        %s155 = scalar_lea.vmem %s3, %s154
      $region20: #{forward_diffusion_pallas.1} parent=15 // pred_fallthru
        _
      // Predicated region
      $region21: #{forward_diffusion_pallas.1} parent=15 // pred_check
        %p156 = pneg %p91
      $region22: #{forward_diffusion_pallas.1} parent=15 // pred_check_branch
        %158 = sbr.rel (%p156) target = $region24
      $region23: #{forward_diffusion_pallas.1} parent=15 // pred_region
        %p159 = scmp.lt.s32.totalorder %s36, 1
        %s160 = scalar_select %p159, %s36, 1
        %p161 = scmp.lt.s32.totalorder %s37, 0
        %s162 = scalar_select %p161, %s37, 0
        %s163 = smul.addr %s162, 4
        %s164 = smul.addr %s160, 4
        %s165 = sadd.s32 %s163, %s164
        %s166 = smul.addr %s165, 2
        %s167 = scalar_lea.vmem %s4, %s166
      $region24: #{forward_diffusion_pallas.1} parent=15 // pred_fallthru
        _
    $region16: #{forward_diffusion_pallas.1} parent=5 // pred_fallthru
      _
    %p168 = scmp.le.s32.totalorder 1, %s29
    %p169 = scmp.lt.s32.totalorder %s29, 3
    %p170 = pnand %p168, %p169
    %p171 = pneg %p170
    // Predicated region
    $region25: #{forward_diffusion_pallas.1} parent=5 // pred_check
      _
    $region26: #{forward_diffusion_pallas.1} parent=5 // pred_check_branch
      %173 = sbr.rel (%p170) target = $region28
    $region27: #{forward_diffusion_pallas.1} parent=5 // pred_region
      %s174 = ssub.s32 %s29, 1
      %p175 = scmp.lt.s32.totalorder %s38, 1
      %s176 = scalar_select %p175, %s38, 1
      %p177 = scmp.lt.s32.totalorder %s39, 0
      %s178 = scalar_select %p177, %s39, 0
      %s179 = smul.addr %s178, 4
      %s180 = smul.addr %s176, 4
      %s181 = sadd.s32 %s179, %s180
      %s182 = smul.addr %s181, 2
      %s183 = scalar_lea.vmem %s3, %s182
      %p184 = pneg %p69
      %p185 = pneg %p66
      %p186 = scmp.lt.s32.totalorder %s38, 1
      %s187 = scalar_select %p186, %s38, 1
      %p188 = scmp.lt.s32.totalorder %s39, 0
      %s189 = scalar_select %p188, %s39, 0
      %s190 = smul.addr %s189, 4
      %s191 = smul.addr %s187, 4
      %s192 = sadd.s32 %s190, %s191
      %s193 = smul.addr %s192, 2
      %s194 = scalar_lea.vmem %s4, %s193
      %p195 = pneg %p97
      %p196 = pneg %p94
      %p197 = pneg %p125
      %p198 = pneg %p122
      %p199 = scmp.lt.s32.totalorder %s38, 1
      %s200 = scalar_select %p199, %s38, 1
      %p201 = scmp.lt.s32.totalorder %s39, 0
      %s202 = scalar_select %p201, %s39, 0
      %s203 = smul.addr %s202, 4
      %s204 = smul.addr %s200, 4
      %s205 = sadd.s32 %s203, %s204
      %s206 = smul.addr %s205, 2
      %s207 = scalar_lea.vmem %s5, %s206
      %p208 = scmp.lt.s32.totalorder %s38, 1
      %s209 = scalar_select %p208, %s38, 1
      %p210 = scmp.lt.s32.totalorder %s39, 0
      %s211 = scalar_select %p210, %s39, 0
      %s212 = smul.addr %s211, 4
      %s213 = smul.addr %s209, 4
      %s214 = sadd.s32 %s212, %s213
      %s215 = smul.addr %s214, 2
      %s216 = scalar_lea.vmem %s3, %s215
      %p217 = scmp.lt.s32.totalorder %s38, 1
      %s218 = scalar_select %p217, %s38, 1
      %p219 = scmp.lt.s32.totalorder %s39, 0
      %s220 = scalar_select %p219, %s39, 0
      %s221 = smul.addr %s220, 4
      %s222 = smul.addr %s218, 4
      %s223 = sadd.s32 %s221, %s222
      %s224 = smul.addr %s223, 2
      %s225 = scalar_lea.vmem %s4, %s224
      %p226 = scmp.lt.s32.totalorder %s38, 1
      %s227 = scalar_select %p226, %s38, 1
      %p228 = scmp.lt.s32.totalorder %s39, 0
      %s229 = scalar_select %p228, %s39, 0
      %s230 = smul.addr %s229, 4
      %s231 = smul.addr %s227, 4
      %s232 = sadd.s32 %s230, %s231
      %s233 = smul.addr %s232, 2
      %s234 = scalar_lea.vmem %s5, %s233
      %s235 = sld [smem:[#allocation3 + %s38]]
      %s236 = sld [smem:[#allocation4 + %s235]]
      %s237 = sld [smem:[#allocation5 + %s235]]
      %v238 = vld [vmem:[%s216] sm:$0xff]
      %v239 = vstv %s236
      %v240 = vmul.f32 %v239, %v238
      %v241 = vld [vmem:[%s225] sm:$0xff]
      %v242 = vstv %s237
      %v243 = vmul.f32 %v242, %v241
      %v244 = vadd.f32 %v240, %v243
      %245 = vst [vmem:[%s234] sm:$0xff] %v244
      %p246 = scmp.lt.s32.totalorder %s38, 1
      %s247 = scalar_select %p246, %s38, 1
      %p248 = scmp.lt.s32.totalorder %s39, 0
      %s249 = scalar_select %p248, %s39, 0
      %s250 = smul.addr %s249, 4
      %s251 = smul.addr %s247, 4
      %s252 = sadd.s32 %s250, %s251
      %s253 = smul.addr %s252, 2
      %s254 = scalar_lea.vmem %s5, %s253
      // Predicated region
      $region29: #{forward_diffusion_pallas.1} parent=27 // pred_check
        %p255 = pneg %p122
      $region30: #{forward_diffusion_pallas.1} parent=27 // pred_check_branch
        %257 = sbr.rel (%p255) target = $region32
      $region31: #{forward_diffusion_pallas.1} parent=27 // pred_region
        _
      $region32: #{forward_diffusion_pallas.1} parent=27 // pred_fallthru
        _
    $region28: #{forward_diffusion_pallas.1} parent=5 // pred_fallthru
      _
    %p258 = scmp.le.s32.totalorder 2, %s29
    // Predicated region
    $region33: #{forward_diffusion_pallas.1} parent=5 // pred_check
      %p259 = pneg %p258
    $region34: #{forward_diffusion_pallas.1} parent=5 // pred_check_branch
      %261 = sbr.rel (%p259) target = $region36
    $region35: #{forward_diffusion_pallas.1} parent=5 // pred_region
      %s262 = ssub.s32 %s29, 2
      // Predicated region
      $region37: #{forward_diffusion_pallas.1} parent=35 // pred_check
        %p263 = pneg %p128
      $region38: #{forward_diffusion_pallas.1} parent=35 // pred_check_branch
        %265 = sbr.rel (%p263) target = $region40
      $region39: #{forward_diffusion_pallas.1} parent=35 // pred_region
        %p266 = scmp.lt.s32.totalorder %s40, 1
        %s267 = scalar_select %p266, %s40, 1
        %p268 = scmp.lt.s32.totalorder %s41, 0
        %s269 = scalar_select %p268, %s41, 0
        %s270 = smul.addr %s269, 4
        %s271 = smul.addr %s267, 4
        %s272 = sadd.s32 %s270, %s271
        %s273 = smul.addr %s272, 2
        %s274 = scalar_lea.vmem %s5, %s273
      $region40: #{forward_diffusion_pallas.1} parent=35 // pred_fallthru
        _
    $region36: #{forward_diffusion_pallas.1} parent=5 // pred_fallthru
      _
  $region6: #{forward_diffusion_pallas.1} parent=0 // loop_footer
    %s33 = sadd.s32 1, %s29
  $region7: #{forward_diffusion_pallas.1} parent=0 // loop_footer_branch
    %28 = sbr.rel target = $region3
  $region8: #{forward_diffusion_pallas.1} parent=0 // loop_exit
    _

</llo_original>
